<compile_context>
chip_gen: v6e
topology: v6e:2x2x1
jax: 0.10.0
libtpu: 0.0.40
codegen_flags: <defaults>
</compile_context>

<pallas_src>
import functools

import jax
import jax.numpy as jnp
from jax.experimental import pallas as pl
from jax.experimental.pallas import tpu as pltpu


_LANE = 128        # pad the class axis of W / bias to this for MXU layout
_SPLIT_MIN = 512   # only force a 2-step grid when each half has >= this many rows


def _round_up(n: int, m: int) -> int:
    return pl.cdiv(n, m) * m


def _linear_kernel(x_ref, w_ref, b_ref, o_ref, *, num_classes):
    """One batch tile: logits = x @ W + b (f32 acc); store only live classes."""
    x = x_ref[...]                                   # (TB, D)     stored dtype
    w = w_ref[...]                                   # (D, C_pad)  resident
    b = b_ref[...]                                   # (1, C_pad)  f32, resident
    logits = jnp.dot(x, w, preferred_element_type=jnp.float32)   # (TB, C_pad) f32
    # Unpadded store: only the live classes hit HBM (masked vst, negligible).
    o_ref[...] = (logits + b)[:, :num_classes].astype(o_ref.dtype)


@functools.partial(jax.jit, static_argnames=("tile_b",))
def logistic_regression_forward(combined_features, weight, bias, *, tile_b=4096):
    """
    combined_features: (B, input_dim)
    weight:            (num_classes, input_dim)   (nn.Linear.weight layout)
    bias:              (num_classes,)
    returns logits:    (B, num_classes)  float32
    """
    x = combined_features
    B, D = x.shape
    C = weight.shape[0]
    C_pad = _round_up(max(C, 1), _LANE)              # MXU-friendly class width

    # Batch tile: large enough to be DMA-bound (not step-overhead-bound),
    # multiple of 8 sublanes; never larger than the (rounded-up) batch.
    TB = min(_round_up(tile_b, 8), _round_up(B, 8))
    num_steps = pl.cdiv(B, TB)
    # v7x megacore: keep >= 2 grid steps when the batch is big enough to split.
    if num_steps < 2 and B >= 2 * _SPLIT_MIN:
        TB = _round_up(pl.cdiv(B, 2), 8)
        num_steps = pl.cdiv(B, TB)

    # Tiny resident operands: transpose W to (D, C_pad) with zero-padded class
    # columns (so the in-kernel dot needs no per-step relayout); pad bias too.
    w_t = jnp.zeros((D, C_pad), x.dtype).at[:, :C].set(weight.astype(x.dtype).T)
    b_p = jnp.zeros((1, C_pad), jnp.float32).at[0, :C].set(bias.astype(jnp.float32))

    itemsize = jnp.dtype(x.dtype).itemsize
    cost = pl.CostEstimate(
        flops=2 * B * D * C_pad,
        transcendentals=0,
        bytes_accessed=(B * D * itemsize            # x stream (single pass)
                        + D * C_pad * itemsize      # resident W^T
                        + C_pad * 4                 # resident bias
                        + B * C * 4),               # unpadded logits writeback
    )

    kernel = functools.partial(_linear_kernel, num_classes=C)

    return pl.pallas_call(
        kernel,
        out_shape=jax.ShapeDtypeStruct((B, C), jnp.float32),
        grid_spec=pltpu.PrefetchScalarGridSpec(
            num_scalar_prefetch=0,
            grid=(num_steps,),
            in_specs=[
                pl.BlockSpec((TB, D), lambda i: (i, 0)),       # x: tiled over B
                pl.BlockSpec((D, C_pad), lambda i: (0, 0)),    # W^T: resident
                pl.BlockSpec((1, C_pad), lambda i: (0, 0)),    # bias: resident
            ],
            out_specs=pl.BlockSpec((TB, C), lambda i: (i, 0)), # unpadded (B, C)
        ),
        compiler_params=pltpu.CompilerParams(
            dimension_semantics=("parallel",)),                # megacore on v7x
        cost_estimate=cost,
    )(x, w_t, b_p)


if __name__ == "__main__":
    # Small shapes consistent with the module: batch=8, input_dim=32, num_classes=2
    batch, input_dim, num_classes = 8, 32, 2

    key = jax.random.PRNGKey(0)
    k_x, k_w, k_b, k_x2 = jax.random.split(key, 4)

    # Deterministic parameter init mimicking nn.Linear (uniform +-1/sqrt(input_dim))
    bound = 1.0 / jnp.sqrt(jnp.float32(input_dim))
    weight = jax.random.uniform(k_w, (num_classes, input_dim),
                                minval=-bound, maxval=bound, dtype=jnp.float32)
    bias = jax.random.uniform(k_b, (num_classes,),
                              minval=-bound, maxval=bound, dtype=jnp.float32)

    combined_features = jax.random.normal(k_x, (batch, input_dim), dtype=jnp.float32)

    # --- small-shape check (single grid step) ---
    ref = combined_features @ weight.T + bias
    logits = logistic_regression_forward(combined_features, weight, bias)
    logits = jax.block_until_ready(logits)
    assert logits.shape == (batch, num_classes)
    assert jnp.allclose(logits, ref, atol=1e-4, rtol=1e-4)

    # --- ragged larger batch: exercises the cdiv grid + edge-block masking
    #     and the 2-step split path (v7x megacore) ---
    big_batch = 2050
    x_big = jax.random.normal(k_x2, (big_batch, input_dim), dtype=jnp.float32)
    ref_big = x_big @ weight.T + bias
    logits_big = logistic_regression_forward(x_big, weight, bias)
    logits_big = jax.block_until_ready(logits_big)
    assert logits_big.shape == (big_batch, num_classes)
    assert jnp.allclose(logits_big, ref_big, atol=1e-4, rtol=1e-4)

    print("KERNEL_OK")
</pallas_src>

<mosaic_0001>
module attributes {stable_mosaic.version = 11 : i64} {
  func.func @_linear_kernel(%arg0: i32, %arg1: memref<8x32xf32, #tpu.memory_space<vmem>>, %arg2: memref<32x128xf32, #tpu.memory_space<vmem>>, %arg3: memref<1x128xf32, #tpu.memory_space<vmem>>, %arg4: memref<8x2xf32, #tpu.memory_space<vmem>>) attributes {dimension_semantics = [#tpu.dimension_semantics<parallel>], iteration_bounds = array<i64: 1>, scalar_prefetch = 0 : i64, scratch_operands = 0 : i64, tpu.core_type = #tpu.core_type<tc>, window_params = [{transform_indices = @transform_0, window_bounds = array<i64: 8, 32>}, {pipeline_mode = #tpu.pipeline_mode<synchronous>, transform_indices = @transform_1, window_bounds = array<i64: 32, 128>}, {pipeline_mode = #tpu.pipeline_mode<synchronous>, transform_indices = @transform_2, window_bounds = array<i64: 1, 128>}, {transform_indices = @transform_3, window_bounds = array<i64: 8, 2>}]} {
    %c0 = arith.constant 0 : index
    %c0_0 = arith.constant 0 : index
    %0 = vector.load %arg1[%c0, %c0_0] : memref<8x32xf32, #tpu.memory_space<vmem>>, vector<8x32xf32>
    %c0_1 = arith.constant 0 : index
    %c0_2 = arith.constant 0 : index
    %1 = vector.load %arg2[%c0_1, %c0_2] : memref<32x128xf32, #tpu.memory_space<vmem>>, vector<32x128xf32>
    %c0_3 = arith.constant 0 : index
    %c0_4 = arith.constant 0 : index
    %2 = vector.load %arg3[%c0_3, %c0_4] : memref<1x128xf32, #tpu.memory_space<vmem>>, vector<1x128xf32>
    %cst = arith.constant dense<0.000000e+00> : vector<8x128xf32>
    %3 = tpu.matmul %0, %1, %cst {dimension_numbers = #tpu.dot_dimension_numbers<[1], [0], [0], [1], [0, 0, 1, 1], [], []>} : vector<8x32xf32>, vector<32x128xf32>, vector<8x128xf32> -> vector<8x128xf32>
    %4 = vector.broadcast %2 : vector<1x128xf32> to vector<8x128xf32>
    %5 = arith.addf %3, %4 : vector<8x128xf32>
    %6 = vector.extract_strided_slice %5 {offsets = [0, 0], sizes = [8, 2], strides = [1, 1]} : vector<8x128xf32> to vector<8x2xf32>
    %c0_5 = arith.constant 0 : index
    %c0_6 = arith.constant 0 : index
    %7 = vector.load %arg4[%c0_5, %c0_6] : memref<8x2xf32, #tpu.memory_space<vmem>>, vector<8x2xf32>
    tpu.vector_store %arg4[%c0_5, %c0_6], %6 {strides = array<i32>} : memref<8x2xf32, #tpu.memory_space<vmem>>, vector<8x2xf32>,
    return
  }
  func.func @transform_0(%arg0: i32) -> (i32, i32) {
    %c0_i32 = arith.constant 0 : i32
    %c0_i32_0 = arith.constant 0 : i32
    return %arg0, %c0_i32 : i32, i32
  }
  func.func @transform_1(%arg0: i32) -> (i32, i32) {
    %c0_i32 = arith.constant 0 : i32
    %c0_i32_0 = arith.constant 0 : i32
    %c0_i32_1 = arith.constant 0 : i32
    return %c0_i32, %c0_i32_0 : i32, i32
  }
  func.func @transform_2(%arg0: i32) -> (i32, i32) {
    %c0_i32 = arith.constant 0 : i32
    %c0_i32_0 = arith.constant 0 : i32
    %c0_i32_1 = arith.constant 0 : i32
    return %c0_i32, %c0_i32_0 : i32, i32
  }
  func.func @transform_3(%arg0: i32) -> (i32, i32) {
    %c0_i32 = arith.constant 0 : i32
    %c0_i32_0 = arith.constant 0 : i32
    return %arg0, %c0_i32 : i32, i32
  }
}

</mosaic_0001>

<llo_original>
// kernel: logistic_regression_forward.1
$region0: #{logistic_regression_forward.1}
  #allocation0 [shape = 'u32[]', space=smem, size = 0x4, offset = 0x4, fixed_abs, tag = 'smem constant byte address 0x4 - core index']
  #allocation1 [shape = 'u32[144,128]{1,0:T(1,128)}', space=vmem, size = 0x12000, scoped, tag = 'internal scratch']
  %s0 = inlined_call_operand.vmem [shape: f32[8,32], index: 0, kind: input, shape index: {}]
  %s1 = inlined_call_operand.vmem [shape: f32[32,128], index: 1, kind: input, shape index: {}]
  %s2 = inlined_call_operand.vmem [shape: f32[1,128], index: 2, kind: input, shape index: {}]
  %s3 = inlined_call_operand.vmem [shape: f32[8,2], index: 3, kind: output, shape index: {}]
  %s4 = sld [smem:[#allocation0]]
  $region22: #{logistic_regression_forward.1} parent=0
    _
  %s6 = ssub.s32 1, %s4
  %s7 = scalar_select 0, %s6, %s4
  // Predicated region
  $region2: #{logistic_regression_forward.1} parent=0 // pred_check
    _
  $region3: #{logistic_regression_forward.1} parent=0 // pred_check_branch
    %9 = sbr.rel (0) target = $region5
  $region4: #{logistic_regression_forward.1} parent=0 // pred_region
    _
  $region5: #{logistic_regression_forward.1} parent=0 // pred_fallthru
    _
  // Predicated region
  $region6: #{logistic_regression_forward.1} parent=0 // pred_check
    _
  $region7: #{logistic_regression_forward.1} parent=0 // pred_check_branch
    %11 = sbr.rel (0) target = $region9
  $region8: #{logistic_regression_forward.1} parent=0 // pred_region
    _
  $region9: #{logistic_regression_forward.1} parent=0 // pred_fallthru
    _
  // Predicated region
  $region10: #{logistic_regression_forward.1} parent=0 // pred_check
    _
  $region11: #{logistic_regression_forward.1} parent=0 // pred_check_branch
    %13 = sbr.rel (0) target = $region13
  $region12: #{logistic_regression_forward.1} parent=0 // pred_region
    _
  $region13: #{logistic_regression_forward.1} parent=0 // pred_fallthru
    _
  %v14 = vld [vmem:[%s0] sm:$0xff]
  %v15 = vld [vmem:[%s1] sm:$0xff]
  %v16 = vld [vmem:[%s1 + $0x8] sm:$0xff]
  %v17 = vld [vmem:[%s1 + $0x10] sm:$0xff]
  %v18 = vld [vmem:[%s1 + $0x18] sm:$0xff]
  %v19 = vld [vmem:[%s2] sm:$0x1]
  %v21 = vlaneseq
  %v22 = vshrl.u32 %v21, 7
  %v23 = vsub.s32 0, %v22
  %v24 = vrot.slane %v19, %v23
  %vm26 = vcmask 261120
  %v28 = vsel %vm26, %v14, 0
  %30 = vmatprep.subr.mxu0 0.0
  %31 = vmatpush1.msra.mxu0 0.0
  %32 = vmatprep.subr.mxu0 0.0
  %33 = vmatpush1.msra.mxu0 0.0
  %34 = vmatprep.subr.mxu0 0.0
  %35 = vmatpush1.msra.mxu0 0.0
  %36 = vmatprep.subr.mxu0 0.0
  %37 = vmatpush1.msra.mxu0 0.0
  %38 = vmatprep.subr.mxu0 0.0
  %39 = vmatpush1.msra.mxu0 0.0
  %40 = vmatprep.subr.mxu0 0.0
  %41 = vmatpush1.msra.mxu0 0.0
  %42 = vmatprep.subr.mxu0 0.0
  %43 = vmatpush1.msra.mxu0 0.0
  %44 = vmatprep.subr.mxu0 0.0
  %45 = vmatpush1.msra.mxu0 0.0
  %46 = vmatprep.subr.mxu0 0.0
  %47 = vmatpush1.msra.mxu0 0.0
  %48 = vmatprep.subr.mxu0 0.0
  %49 = vmatpush1.msra.mxu0 0.0
  %50 = vmatprep.subr.mxu0 0.0
  %51 = vmatpush1.msra.mxu0 0.0
  %52 = vmatprep.subr.mxu0 0.0
  %53 = vmatpush1.msra.mxu0 0.0
  %54 = vmatprep.subr.mxu0 0.0
  %55 = vmatpush1.msra.mxu0 %v18
  %56 = vmatprep.subr.mxu0 0.0
  %57 = vmatpush1.msra.mxu0 %v17
  %58 = vmatprep.subr.mxu0 0.0
  %59 = vmatpush1.msra.mxu0 %v16
  %60 = vmatprep.subr.mxu0 0.0
  %61 = vmatpush1.msra.mxu0 %v15
  %62 = vmatprep.subr.mxu0 0.0
  %63 = vmatpush2.msra.mxu0 0.0
  %64 = vmatprep.subr.mxu0 0.0
  %65 = vmatpush2.msra.mxu0 0.0
  %66 = vmatprep.subr.mxu0 0.0
  %67 = vmatpush2.msra.mxu0 0.0
  %68 = vmatprep.subr.mxu0 0.0
  %69 = vmatpush2.msra.mxu0 0.0
  %70 = vmatprep.subr.mxu0 0.0
  %71 = vmatpush2.msra.mxu0 0.0
  %72 = vmatprep.subr.mxu0 0.0
  %73 = vmatpush2.msra.mxu0 0.0
  %74 = vmatprep.subr.mxu0 0.0
  %75 = vmatpush2.msra.mxu0 0.0
  %76 = vmatprep.subr.mxu0 0.0
  %77 = vmatpush2.msra.mxu0 0.0
  %78 = vmatprep.subr.mxu0 0.0
  %79 = vmatpush2.msra.mxu0 0.0
  %80 = vmatprep.subr.mxu0 0.0
  %81 = vmatpush2.msra.mxu0 0.0
  %82 = vmatprep.subr.mxu0 0.0
  %83 = vmatpush2.msra.mxu0 0.0
  %84 = vmatprep.subr.mxu0 0.0
  %85 = vmatpush2.msra.mxu0 0.0
  %86 = vmatprep.subr.mxu0 0.0
  %87 = vmatpush2.msra.mxu0 0.0
  %88 = vmatprep.subr.mxu0 0.0
  %89 = vmatpush2.msra.mxu0 0.0
  %90 = vmatprep.subr.mxu0 0.0
  %91 = vmatpush2.msra.mxu0 0.0
  %92 = vmatprep.subr.mxu0 0.0
  %93 = vmatpush2.msra.mxu0 0.0
  %94 = vmatprep.mubr.f32.mxu0 0.0
  %95 = vmatmul.mubr.f32.gmra.mxu0 %v28
  %v96 = vpop.f32.mrf.mxu0
  %v97 = vadd.f32 %v24, %v96
  %v98 = vpop.f32.mrf.mxu0
  %99 = vdwg.mxu0
  %vm100 = vcmask 15360
  %101 = vst.msk [vmem:[%s3] sm:$0xff] %vm100, %v97
  // Predicated region
  $region14: #{logistic_regression_forward.1} parent=0 // pred_check
    _
  $region15: #{logistic_regression_forward.1} parent=0 // pred_check_branch
    %103 = sbr.rel (0) target = $region17
  $region16: #{logistic_regression_forward.1} parent=0 // pred_region
    _
  $region17: #{logistic_regression_forward.1} parent=0 // pred_fallthru
    _
  // Predicated region
  $region18: #{logistic_regression_forward.1} parent=0 // pred_check
    _
  $region19: #{logistic_regression_forward.1} parent=0 // pred_check_branch
    %105 = sbr.rel (0) target = $region21
  $region20: #{logistic_regression_forward.1} parent=0 // pred_region
    _
  $region21: #{logistic_regression_forward.1} parent=0 // pred_fallthru
    _

</llo_original>
